<compile_context>
chip_gen: v7x
topology: tpu7x:2x2x1
jax: 0.10.0
libtpu: 0.0.40
codegen_flags: <defaults>
</compile_context>

<pallas_src>
import jax
import jax.numpy as jnp
from jax.experimental import pallas as pl
from jax.experimental.pallas import tpu as pltpu


def _clip_loss_kernel(scale_ref, e1_ref, e2t_ref, row_ref, col_ref,
                      m_ref, l_ref, d_ref):
    i = pl.program_id(0)
    j = pl.program_id(1)
    n_j = pl.num_programs(1)

    scale = scale_ref[0]  # f32 scalar from SMEM

    # logits tile: (tile, D) @ (D, tile) on the MXU, bf16 operands, f32 accum.
    s = scale * jnp.dot(e1_ref[...], e2t_ref[...],
                        preferred_element_type=jnp.float32)            # (tm, tn)

    # ---- column-direction partial logsumexp for this (i, j) tile -----------
    # One partial per row tile; combined across i in the wrapper with a tiny
    # (n_i, N) logsumexp.  (If the XLU/vex slot ever saturates, these
    # reductions can be moved onto the MXU via a ones-vector matmul.)
    cmax = jnp.max(s, axis=0, keepdims=True)                           # (1, tn)
    csum = jnp.sum(jnp.exp(s - cmax), axis=0, keepdims=True)           # (1, tn)
    col_ref[...] = (cmax + jnp.log(csum))[None]                        # (1, 1, tn)

    # ---- row-direction online softmax across the j (column tile) sweep -----
    @pl.when(j == 0)
    def _init():
        m_ref[...] = jnp.full_like(m_ref, -jnp.inf)
        l_ref[...] = jnp.zeros_like(l_ref)
        d_ref[...] = jnp.zeros_like(d_ref)

    m_prev = m_ref[...]                                                # (tm, 1)
    m_new = jnp.maximum(m_prev, jnp.max(s, axis=1, keepdims=True))
    l_ref[...] = (l_ref[...] * jnp.exp(m_prev - m_new)
                  + jnp.sum(jnp.exp(s - m_new), axis=1, keepdims=True))
    m_ref[...] = m_new

    # Diagonal logits only live in the i == j tiles.
    @pl.when(i == j)
    def _diag():
        rr = jax.lax.broadcasted_iota(jnp.int32, s.shape, 0)
        cc = jax.lax.broadcasted_iota(jnp.int32, s.shape, 1)
        d_ref[...] = jnp.sum(jnp.where(rr == cc, s, 0.0),
                             axis=1, keepdims=True)                   # (tm, 1)

    # Last column tile: this row tile's loss contribution as a single scalar,
    #   sum_r [ logsumexp_row_r - 2 * diag_r ]
    @pl.when(j == n_j - 1)
    def _finish_rows():
        vals = m_ref[...] + jnp.log(l_ref[...]) - 2.0 * d_ref[...]     # (tm, 1)
        row_ref[...] = jnp.sum(vals, keepdims=True)[None]              # (1, 1, 1)


# Generation-safe VMEM budget: fits v7x's 64 MiB/TC with slack; far below the
# 128 MiB of v5e/v6e.
_VMEM_BUDGET = 48 * 1024 * 1024


def _vmem_bytes(tile, d, itemsize):
    in_bytes = 2 * 2 * tile * d * itemsize        # e1 + e2^T tiles, double-buffered
    work = 4 * tile * tile * 4                    # s / exp / mask f32 intermediates
    return in_bytes + work + (2 << 20)            # + scratch / outputs / slack


def _pick_tile(n, d, itemsize):
    for t in (1024, 512, 256, 128):
        if n % t == 0 and _vmem_bytes(t, d, itemsize) <= _VMEM_BUDGET:
            return t
    # TODO(synk): ragged / tiny batches fall back to a single full-array tile;
    # very large ragged N would need padding + masking instead.
    return n


def clip_loss_norm(embedding_1, embedding_2, logit_scale=1.0, *,
                   tile=None, matmul_dtype=jnp.bfloat16):
    """Pallas implementation of CLIPLossNorm.forward (returns scalar f32 loss)."""
    assert embedding_1.shape == embedding_2.shape
    assert embedding_1.ndim == 2
    n, d = embedding_1.shape

    # Hoisted normalization: O(N*D) once in the wrapper instead of
    # O(N^2*D/tile) inside the grid; bf16 copies halve HBM streaming traffic
    # and feed the MXU in its native dtype.  embedding_2 is pre-transposed so
    # the kernel runs a standard (M,K)x(K,N) contraction (no per-step vxpose).
    e1 = embedding_1.astype(jnp.float32)
    e2 = embedding_2.astype(jnp.float32)
    e1n = (e1 * jax.lax.rsqrt(jnp.sum(e1 * e1, axis=1, keepdims=True))
           ).astype(matmul_dtype)                                     # (N, D)
    e2nt = (e2 * jax.lax.rsqrt(jnp.sum(e2 * e2, axis=1, keepdims=True))
            ).T.astype(matmul_dtype)                                  # (D, N)

    itemsize = jnp.dtype(matmul_dtype).itemsize
    if tile is None:
        tile = _pick_tile(n, d, itemsize)
    assert n % tile == 0, "batch must be divisible by the chosen tile"
    n_i = n_j = n // tile

    # Learnable CLIP scale goes through SMEM -> no recompile when it changes.
    scale = jnp.reshape(jnp.asarray(logit_scale, dtype=jnp.float32), (1,))

    vmem_limit = int(min(_VMEM_BUDGET,
                         max(32 * 1024 * 1024, _vmem_bytes(tile, d, itemsize))))

    row_part, col_part = pl.pallas_call(
        _clip_loss_kernel,
        out_shape=(
            jax.ShapeDtypeStruct((n_i, 1, 1), jnp.float32),   # per-row-tile scalar
            jax.ShapeDtypeStruct((n_i, 1, n), jnp.float32),   # per-row-tile column partial LSEs
        ),
        grid_spec=pltpu.PrefetchScalarGridSpec(
            num_scalar_prefetch=0,
            grid=(n_i, n_j),
            in_specs=[
                pl.BlockSpec(memory_space=pltpu.MemorySpace.SMEM),    # logit_scale (1,)
                pl.BlockSpec((tile, d), lambda i, j: (i, 0)),         # e1n row tile
                # TODO(synk): consider pipeline_mode=pl.Buffered(3) here if
                # xprof shows exposed DMA for small D.
                pl.BlockSpec((d, tile), lambda i, j: (0, j)),         # e2n^T column tile
            ],
            out_specs=[
                pl.BlockSpec((1, 1, 1), lambda i, j: (i, 0, 0)),
                pl.BlockSpec((1, 1, tile), lambda i, j: (i, 0, j)),
            ],
            scratch_shapes=[
                pltpu.VMEM((tile, 1), jnp.float32),   # running row max
                pltpu.VMEM((tile, 1), jnp.float32),   # running row sum(exp)
                pltpu.VMEM((tile, 1), jnp.float32),   # diagonal logits
            ]),
        compiler_params=pltpu.CompilerParams(
            dimension_semantics=("parallel", "arbitrary"),  # i shardable across TCs (v7x)
            vmem_limit_bytes=vmem_limit),
    )(scale, e1n, e2nt)

    # Tiny epilogue in plain JAX: combine per-row-tile column partials and fold
    # everything to the scalar loss.
    col_lse = jax.nn.logsumexp(col_part[:, 0, :], axis=0)             # (N,)
    return (jnp.sum(row_part) + jnp.sum(col_lse)) / (2.0 * n)


def _reference_loss(e1, e2, logit_scale=1.0):
    """Pure-JAX reference mirroring the PyTorch forward."""
    e1 = e1.astype(jnp.float32)
    e2 = e2.astype(jnp.float32)
    norm = jnp.linalg.norm(e1, axis=1, keepdims=True) @ jnp.linalg.norm(
        e2, axis=1, keepdims=True).T
    logits_1 = logit_scale * (e1 @ e2.T) / norm
    logits_2 = logit_scale * (e2 @ e1.T) / norm.T
    labels = jnp.arange(logits_1.shape[0])

    def ce(logits):
        lse = jax.nn.logsumexp(logits, axis=1)
        picked = logits[jnp.arange(logits.shape[0]), labels]
        return jnp.mean(lse - picked)

    return 0.5 * (ce(logits_1) + ce(logits_2))


if __name__ == "__main__":
    key = jax.random.PRNGKey(0)
    k1, k2, k3, k4 = jax.random.split(key, 4)

    # Small single-tile case, f32 MXU path (tight tolerance validates the math).
    N, D = 8, 32
    embedding_1 = jax.random.normal(k1, (N, D), dtype=jnp.float32)
    embedding_2 = jax.random.normal(k2, (N, D), dtype=jnp.float32)
    loss = jax.block_until_ready(
        clip_loss_norm(embedding_1, embedding_2, 1.0, matmul_dtype=jnp.float32))
    ref = _reference_loss(embedding_1, embedding_2, 1.0)
    assert jnp.allclose(loss, ref, atol=1e-4, rtol=1e-4), (loss, ref)

    # Multi-tile grid (2x2), bf16 MXU path.
    N2, D2 = 256, 64
    f1 = jax.random.normal(k3, (N2, D2), dtype=jnp.float32)
    f2 = jax.random.normal(k4, (N2, D2), dtype=jnp.float32)
    loss2 = jax.block_until_ready(clip_loss_norm(f1, f2, 1.0, tile=128))
    ref2 = _reference_loss(f1, f2, 1.0)
    assert jnp.allclose(loss2, ref2, atol=5e-3, rtol=5e-3), (loss2, ref2)

    # Large learned scale (CLIP's exp-scale commonly reaches ~100): exercises the
    # online-softmax path that the old constant-shift trick could not handle.
    loss3 = jax.block_until_ready(clip_loss_norm(f1, f2, 75.0, tile=128))
    ref3 = _reference_loss(f1, f2, 75.0)
    assert jnp.allclose(loss3, ref3, atol=2e-2, rtol=2e-2), (loss3, ref3)

    print("KERNEL_OK")
</pallas_src>

<mosaic_0001>
module attributes {stable_mosaic.version = 11 : i64} {
  func.func @_clip_loss_kernel(%arg0: i32, %arg1: i32, %arg2: memref<1xf32, #tpu.memory_space<smem>>, %arg3: memref<8x32xf32, #tpu.memory_space<vmem>>, %arg4: memref<32x8xf32, #tpu.memory_space<vmem>>, %arg5: memref<1x1x1xf32, #tpu.memory_space<vmem>>, %arg6: memref<1x1x8xf32, #tpu.memory_space<vmem>>, %arg7: memref<8x1xf32, #tpu.memory_space<vmem>>, %arg8: memref<8x1xf32, #tpu.memory_space<vmem>>, %arg9: memref<8x1xf32, #tpu.memory_space<vmem>>) attributes {dimension_semantics = [#tpu.dimension_semantics<parallel>, #tpu.dimension_semantics<arbitrary>], iteration_bounds = array<i64: 1, 1>, scalar_prefetch = 0 : i64, scratch_operands = 3 : i64, tpu.core_type = #tpu.core_type<tc>, window_params = [{transform_indices = @transform_0, window_bounds = array<i64: 1>}, {transform_indices = @transform_1, window_bounds = array<i64: 8, 32>}, {transform_indices = @transform_2, window_bounds = array<i64: 32, 8>}, {transform_indices = @transform_3, window_bounds = array<i64: 1, 1, 1>}, {transform_indices = @transform_4, window_bounds = array<i64: 1, 1, 8>}]} {
    %c0 = arith.constant 0 : index
    %0 = memref.load %arg2[%c0] : memref<1xf32, #tpu.memory_space<smem>>
    %c0_0 = arith.constant 0 : index
    %c0_1 = arith.constant 0 : index
    %1 = vector.load %arg3[%c0_0, %c0_1] : memref<8x32xf32, #tpu.memory_space<vmem>>, vector<8x32xf32>
    %c0_2 = arith.constant 0 : index
    %c0_3 = arith.constant 0 : index
    %2 = vector.load %arg4[%c0_2, %c0_3] : memref<32x8xf32, #tpu.memory_space<vmem>>, vector<32x8xf32>
    %cst = arith.constant dense<0.000000e+00> : vector<8x8xf32>
    %3 = tpu.matmul %1, %2, %cst {dimension_numbers = #tpu.dot_dimension_numbers<[1], [0], [0], [1], [0, 0, 1, 1], [], []>} : vector<8x32xf32>, vector<32x8xf32>, vector<8x8xf32> -> vector<8x8xf32>
    %4 = vector.broadcast %0 : f32 to vector<8x8xf32>
    %5 = arith.mulf %4, %3 : vector<8x8xf32>
    %cst_4 = arith.constant dense<0xFF800000> : vector<8xf32>
    %6 = vector.multi_reduction <maximumf>, %5, %cst_4 [0] : vector<8x8xf32> to vector<8xf32>
    %7 = vector.shape_cast %6 : vector<8xf32> to vector<1x8xf32>
    %8 = vector.broadcast %7 : vector<1x8xf32> to vector<8x8xf32>
    %9 = arith.subf %5, %8 : vector<8x8xf32>
    %10 = math.exp %9 : vector<8x8xf32>
    %cst_5 = arith.constant dense<0.000000e+00> : vector<8xf32>
    %11 = vector.multi_reduction <add>, %10, %cst_5 [0] : vector<8x8xf32> to vector<8xf32>
    %12 = vector.shape_cast %11 : vector<8xf32> to vector<1x8xf32>
    %13 = math.log %12 : vector<1x8xf32>
    %14 = arith.addf %7, %13 : vector<1x8xf32>
    %15 = vector.shape_cast %14 : vector<1x8xf32> to vector<1x1x8xf32>
    %c0_6 = arith.constant 0 : index
    %c0_7 = arith.constant 0 : index
    %c0_8 = arith.constant 0 : index
    %16 = vector.load %arg6[%c0_6, %c0_7, %c0_8] : memref<1x1x8xf32, #tpu.memory_space<vmem>>, vector<1x1x8xf32>
    tpu.vector_store %arg6[%c0_6, %c0_7, %c0_8], %15 {strides = array<i32>} : memref<1x1x8xf32, #tpu.memory_space<vmem>>, vector<1x1x8xf32>,
    %c0_i32 = arith.constant 0 : i32
    %17 = arith.cmpi eq, %arg1, %c0_i32 : i32
    %18 = arith.extui %17 : i1 to i32
    %c0_i32_9 = arith.constant 0 : i32
    %19 = arith.cmpi ne, %18, %c0_i32_9 : i32
    scf.if %19 {
      %cst_23 = arith.constant 0xFF800000 : f32
      %42 = vector.broadcast %cst_23 : f32 to vector<8x1xf32>
      %c0_24 = arith.constant 0 : index
      %c0_25 = arith.constant 0 : index
      %43 = vector.load %arg7[%c0_24, %c0_25] : memref<8x1xf32, #tpu.memory_space<vmem>>, vector<8x1xf32>
      tpu.vector_store %arg7[%c0_24, %c0_25], %42 {strides = array<i32>} : memref<8x1xf32, #tpu.memory_space<vmem>>, vector<8x1xf32>,
      %cst_26 = arith.constant 0.000000e+00 : f32
      %44 = vector.broadcast %cst_26 : f32 to vector<8x1xf32>
      %c0_27 = arith.constant 0 : index
      %c0_28 = arith.constant 0 : index
      %45 = vector.load %arg8[%c0_27, %c0_28] : memref<8x1xf32, #tpu.memory_space<vmem>>, vector<8x1xf32>
      tpu.vector_store %arg8[%c0_27, %c0_28], %44 {strides = array<i32>} : memref<8x1xf32, #tpu.memory_space<vmem>>, vector<8x1xf32>,
      %cst_29 = arith.constant 0.000000e+00 : f32
      %46 = vector.broadcast %cst_29 : f32 to vector<8x1xf32>
      %c0_30 = arith.constant 0 : index
      %c0_31 = arith.constant 0 : index
      %47 = vector.load %arg9[%c0_30, %c0_31] : memref<8x1xf32, #tpu.memory_space<vmem>>, vector<8x1xf32>
      tpu.vector_store %arg9[%c0_30, %c0_31], %46 {strides = array<i32>} : memref<8x1xf32, #tpu.memory_space<vmem>>, vector<8x1xf32>,
    } else {
    }
    %c0_10 = arith.constant 0 : index
    %c0_11 = arith.constant 0 : index
    %20 = vector.load %arg7[%c0_10, %c0_11] : memref<8x1xf32, #tpu.memory_space<vmem>>, vector<8x1xf32>
    %cst_12 = arith.constant dense<0xFF800000> : vector<8xf32>
    %21 = vector.multi_reduction <maximumf>, %5, %cst_12 [1] : vector<8x8xf32> to vector<8xf32>
    %22 = vector.shape_cast %21 : vector<8xf32> to vector<8x1xf32>
    %23 = arith.maximumf %20, %22 : vector<8x1xf32>
    %c0_13 = arith.constant 0 : index
    %c0_14 = arith.constant 0 : index
    %24 = vector.load %arg8[%c0_13, %c0_14] : memref<8x1xf32, #tpu.memory_space<vmem>>, vector<8x1xf32>
    %25 = arith.subf %20, %23 : vector<8x1xf32>
    %26 = math.exp %25 : vector<8x1xf32>
    %27 = arith.mulf %24, %26 : vector<8x1xf32>
    %28 = vector.broadcast %23 : vector<8x1xf32> to vector<8x8xf32>
    %29 = arith.subf %5, %28 : vector<8x8xf32>
    %30 = math.exp %29 : vector<8x8xf32>
    %cst_15 = arith.constant dense<0.000000e+00> : vector<8xf32>
    %31 = vector.multi_reduction <add>, %30, %cst_15 [1] : vector<8x8xf32> to vector<8xf32>
    %32 = vector.shape_cast %31 : vector<8xf32> to vector<8x1xf32>
    %33 = arith.addf %27, %32 : vector<8x1xf32>
    %c0_16 = arith.constant 0 : index
    %c0_17 = arith.constant 0 : index
    %34 = vector.load %arg8[%c0_16, %c0_17] : memref<8x1xf32, #tpu.memory_space<vmem>>, vector<8x1xf32>
    tpu.vector_store %arg8[%c0_16, %c0_17], %33 {strides = array<i32>} : memref<8x1xf32, #tpu.memory_space<vmem>>, vector<8x1xf32>,
    %c0_18 = arith.constant 0 : index
    %c0_19 = arith.constant 0 : index
    %35 = vector.load %arg7[%c0_18, %c0_19] : memref<8x1xf32, #tpu.memory_space<vmem>>, vector<8x1xf32>
    tpu.vector_store %arg7[%c0_18, %c0_19], %23 {strides = array<i32>} : memref<8x1xf32, #tpu.memory_space<vmem>>, vector<8x1xf32>,
    %36 = arith.cmpi eq, %arg0, %arg1 : i32
    %37 = arith.extui %36 : i1 to i32
    %c0_i32_20 = arith.constant 0 : i32
    %38 = arith.cmpi ne, %37, %c0_i32_20 : i32
    scf.if %38 {
      %42 = tpu.iota {dimensions = array<i32: 0>} : vector<8x8xi32>
      %43 = tpu.iota {dimensions = array<i32: 1>} : vector<8x8xi32>
      %44 = arith.cmpi eq, %42, %43 : vector<8x8xi32>
      %cst_23 = arith.constant 0.000000e+00 : f32
      %45 = vector.broadcast %cst_23 : f32 to vector<8x8xf32>
      %46 = arith.select %44, %5, %45 : vector<8x8xi1>, vector<8x8xf32>
      %cst_24 = arith.constant dense<0.000000e+00> : vector<8xf32>
      %47 = vector.multi_reduction <add>, %46, %cst_24 [1] : vector<8x8xf32> to vector<8xf32>
      %48 = vector.shape_cast %47 : vector<8xf32> to vector<8x1xf32>
      %c0_25 = arith.constant 0 : index
      %c0_26 = arith.constant 0 : index
      %49 = vector.load %arg9[%c0_25, %c0_26] : memref<8x1xf32, #tpu.memory_space<vmem>>, vector<8x1xf32>
      tpu.vector_store %arg9[%c0_25, %c0_26], %48 {strides = array<i32>} : memref<8x1xf32, #tpu.memory_space<vmem>>, vector<8x1xf32>,
    } else {
    }
    %c0_i32_21 = arith.constant 0 : i32
    %39 = arith.cmpi eq, %arg1, %c0_i32_21 : i32
    %40 = arith.extui %39 : i1 to i32
    %c0_i32_22 = arith.constant 0 : i32
    %41 = arith.cmpi ne, %40, %c0_i32_22 : i32
    scf.if %41 {
      %c0_23 = arith.constant 0 : index
      %c0_24 = arith.constant 0 : index
      %42 = vector.load %arg7[%c0_23, %c0_24] : memref<8x1xf32, #tpu.memory_space<vmem>>, vector<8x1xf32>
      %c0_25 = arith.constant 0 : index
      %c0_26 = arith.constant 0 : index
      %43 = vector.load %arg8[%c0_25, %c0_26] : memref<8x1xf32, #tpu.memory_space<vmem>>, vector<8x1xf32>
      %44 = math.log %43 : vector<8x1xf32>
      %45 = arith.addf %42, %44 : vector<8x1xf32>
      %c0_27 = arith.constant 0 : index
      %c0_28 = arith.constant 0 : index
      %46 = vector.load %arg9[%c0_27, %c0_28] : memref<8x1xf32, #tpu.memory_space<vmem>>, vector<8x1xf32>
      %cst_29 = arith.constant 2.000000e+00 : f32
      %47 = vector.broadcast %cst_29 : f32 to vector<8x1xf32>
      %48 = arith.mulf %47, %46 : vector<8x1xf32>
      %49 = arith.subf %45, %48 : vector<8x1xf32>
      %50 = vector.shape_cast %49 : vector<8x1xf32> to vector<1x8x1xf32>
      %cst_30 = arith.constant dense<0.000000e+00> : vector<1xf32>
      %51 = vector.multi_reduction <add>, %50, %cst_30 [1, 2] : vector<1x8x1xf32> to vector<1xf32>
      %52 = vector.shape_cast %51 : vector<1xf32> to vector<1x1x1xf32>
      %53 = vector.extract %52[0, 0, 0] : f32 from vector<1x1x1xf32>
      %54 = vector.broadcast %53 : f32 to vector<1x1xf32>
      %55 = vector.shape_cast %54 : vector<1x1xf32> to vector<1x1x1xf32>
      %c0_31 = arith.constant 0 : index
      %c0_32 = arith.constant 0 : index
      %c0_33 = arith.constant 0 : index
      %56 = vector.load %arg5[%c0_31, %c0_32, %c0_33] : memref<1x1x1xf32, #tpu.memory_space<vmem>>, vector<1x1x1xf32>
      tpu.vector_store %arg5[%c0_31, %c0_32, %c0_33], %55 {strides = array<i32>} : memref<1x1x1xf32, #tpu.memory_space<vmem>>, vector<1x1x1xf32>,
    } else {
    }
    return
  }
  func.func @transform_0(%arg0: i32, %arg1: i32) -> i32 {
    %c0_i32 = arith.constant 0 : i32
    %c0_i32_0 = arith.constant 0 : i32
    return %c0_i32 : i32
  }
  func.func @transform_1(%arg0: i32, %arg1: i32) -> (i32, i32) {
    %c0_i32 = arith.constant 0 : i32
    %c0_i32_0 = arith.constant 0 : i32
    return %arg0, %c0_i32 : i32, i32
  }
  func.func @transform_2(%arg0: i32, %arg1: i32) -> (i32, i32) {
    %c0_i32 = arith.constant 0 : i32
    %c0_i32_0 = arith.constant 0 : i32
    return %c0_i32, %arg1 : i32, i32
  }
  func.func @transform_3(%arg0: i32, %arg1: i32) -> (i32, i32, i32) {
    %c0_i32 = arith.constant 0 : i32
    %c0_i32_0 = arith.constant 0 : i32
    %c0_i32_1 = arith.constant 0 : i32
    return %arg0, %c0_i32, %c0_i32_0 : i32, i32, i32
  }
  func.func @transform_4(%arg0: i32, %arg1: i32) -> (i32, i32, i32) {
    %c0_i32 = arith.constant 0 : i32
    %c0_i32_0 = arith.constant 0 : i32
    return %arg0, %c0_i32, %arg1 : i32, i32, i32
  }
}

</mosaic_0001>

<llo_original>
// kernel: tpu_custom_call.1
$region0: #{tpu_custom_call.1}
  #allocation0 [shape = 'u32[]', space=smem, size = 0x4, offset = 0x4, fixed_abs, tag = 'smem constant byte address 0x4 - core index']
  #allocation1 [shape = 'u32[144,128]{1,0:T(1,128)}', space=vmem, size = 0x12000, scoped, tag = 'internal scratch']
  #allocation2 [shape = 'f32[8,1]{1,0:T(8,128)}', space=vmem, size = 0x1000, scoped, tag = 'scratch operand']
  #allocation3 [shape = 'f32[8,1]{1,0:T(8,128)}', space=vmem, size = 0x1000, scoped, tag = 'scratch operand']
  #allocation4 [shape = 'f32[8,1]{1,0:T(8,128)}', space=vmem, size = 0x1000, scoped, tag = 'scratch operand']
  #allocation5 [shape = 'f32[1]{0:T(128)S(6)}', space=smem, size = 0x200, scoped, tag = 'scoped memory for tpu_custom_call.1']
  %s0 = inlined_call_operand.<no memory space> [shape: f32[1], index: 0, kind: input, shape index: {}]
  %s1 = inlined_call_operand.vmem [shape: f32[8,32], index: 1, kind: input, shape index: {}]
  %s2 = inlined_call_operand.vmem [shape: f32[32,8], index: 2, kind: input, shape index: {}]
  %s3 = inlined_call_operand.hbm [shape: f32[1,1,1], index: 3, kind: output, shape index: {0}]
  %s4 = inlined_call_operand.hbm [shape: f32[1,1,8], index: 4, kind: output, shape index: {1}]
  %5 = xla_tuple %s3, %s4
  %s6 = sld [smem:[#allocation0]]
  $region42: #{tpu_custom_call.1} parent=0
    _
  %s8 = ssub.s32 1, %s6
  %s9 = scalar_select 0, %s8, %s6
  %10 = sst [smem:[#allocation5]] %s0
  $region1: #{tpu_custom_call.1} parent=0
    #allocation6 [shape = 'u8[512]{0}', space=vmem, size = 0x400, scoped, tag = 'output window, operand 0, single buffered']
    #allocation7 [shape = 's32[1]{0}', space=sflag, size = 0x4, scoped, tag = 'scoped memory for tpu_custom_call.1']
    #allocation8 [shape = 'u8[512]{0}', space=vmem, size = 0x400, scoped, tag = 'output window, operand 1, single buffered']
    #allocation9 [shape = 's32[1]{0}', space=sflag, size = 0x4, scoped, tag = 'scoped memory for tpu_custom_call.1']
    %11 = vsyncpa [#allocation7], 0
    %12 = vsyncpa [#allocation9], 0
    // Predicated region
    $region2: #{tpu_custom_call.1} parent=1 // pred_check
      _
    $region3: #{tpu_custom_call.1} parent=1 // pred_check_branch
      %14 = sbr.rel (0) target = $region5
    $region4: #{tpu_custom_call.1} parent=1 // pred_region
      _
    $region5: #{tpu_custom_call.1} parent=1 // pred_fallthru
      _
    // Predicated region
    $region6: #{tpu_custom_call.1} parent=1 // pred_check
      _
    $region7: #{tpu_custom_call.1} parent=1 // pred_check_branch
      %16 = sbr.rel (0) target = $region9
    $region8: #{tpu_custom_call.1} parent=1 // pred_region
      _
    $region9: #{tpu_custom_call.1} parent=1 // pred_fallthru
      _
    // Predicated region
    $region10: #{tpu_custom_call.1} parent=1 // pred_check
      _
    $region11: #{tpu_custom_call.1} parent=1 // pred_check_branch
      %18 = sbr.rel (0) target = $region13
    $region12: #{tpu_custom_call.1} parent=1 // pred_region
      _
    $region13: #{tpu_custom_call.1} parent=1 // pred_fallthru
      _
    %s19 = sld [smem:[#allocation5]]
    %v20 = vld [vmem:[%s1] sm:$0xff]
    %v21 = vld [vmem:[%s2] sm:$0xff]
    %v22 = vld [vmem:[%s2 + $0x8] sm:$0xff]
    %v23 = vld [vmem:[%s2 + $0x10] sm:$0xff]
    %v24 = vld [vmem:[%s2 + $0x18] sm:$0xff]
    %vm25 = vcmask 261120
    %v27 = vsel %vm25, %v20, 0
    %29 = vmatprep.subr.mxu0 0.0
    %30 = vmatpush1.msra.mxu0 %v21
    %31 = vmatprep.subr.mxu0 0.0
    %32 = vmatpush1.msra.mxu0 %v22
    %33 = vmatprep.subr.mxu0 0.0
    %34 = vmatpush1.msra.mxu0 %v23
    %35 = vmatprep.subr.mxu0 0.0
    %36 = vmatpush1.msra.mxu0 %v24
    %37 = vmatprep.subr.mxu0 0.0
    %38 = vmatpush1.msra.mxu0 0.0
    %39 = vmatprep.subr.mxu0 0.0
    %40 = vmatpush1.msra.mxu0 0.0
    %41 = vmatprep.subr.mxu0 0.0
    %42 = vmatpush1.msra.mxu0 0.0
    %43 = vmatprep.subr.mxu0 0.0
    %44 = vmatpush1.msra.mxu0 0.0
    %45 = vmatprep.subr.mxu0 0.0
    %46 = vmatpush1.msra.mxu0 0.0
    %47 = vmatprep.subr.mxu0 0.0
    %48 = vmatpush1.msra.mxu0 0.0
    %49 = vmatprep.subr.mxu0 0.0
    %50 = vmatpush1.msra.mxu0 0.0
    %51 = vmatprep.subr.mxu0 0.0
    %52 = vmatpush1.msra.mxu0 0.0
    %53 = vmatprep.subr.mxu0 0.0
    %54 = vmatpush1.msra.mxu0 0.0
    %55 = vmatprep.subr.mxu0 0.0
    %56 = vmatpush1.msra.mxu0 0.0
    %57 = vmatprep.subr.mxu0 0.0
    %58 = vmatpush1.msra.mxu0 0.0
    %59 = vmatprep.subr.mxu0 0.0
    %60 = vmatpush1.msra.mxu0 0.0
    %61 = vmatprep.subr.mxu0 0.0
    %62 = vmatpush1.msra.mxu0 0.0
    %63 = vmatprep.subr.mxu0 0.0
    %64 = vmatpush1.msra.mxu0 0.0
    %65 = vmatprep.subr.mxu0 0.0
    %66 = vmatpush1.msra.mxu0 0.0
    %67 = vmatprep.subr.mxu0 0.0
    %68 = vmatpush1.msra.mxu0 0.0
    %69 = vmatprep.subr.mxu0 0.0
    %70 = vmatpush1.msra.mxu0 0.0
    %71 = vmatprep.subr.mxu0 0.0
    %72 = vmatpush1.msra.mxu0 0.0
    %73 = vmatprep.subr.mxu0 0.0
    %74 = vmatpush1.msra.mxu0 0.0
    %75 = vmatprep.subr.mxu0 0.0
    %76 = vmatpush1.msra.mxu0 0.0
    %77 = vmatprep.subr.mxu0 0.0
    %78 = vmatpush1.msra.mxu0 0.0
    %79 = vmatprep.subr.mxu0 0.0
    %80 = vmatpush1.msra.mxu0 0.0
    %81 = vmatprep.subr.mxu0 0.0
    %82 = vmatpush1.msra.mxu0 0.0
    %83 = vmatprep.subr.mxu0 0.0
    %84 = vmatpush1.msra.mxu0 0.0
    %85 = vmatprep.subr.mxu0 0.0
    %86 = vmatpush1.msra.mxu0 0.0
    %87 = vmatprep.subr.mxu0 0.0
    %88 = vmatpush1.msra.mxu0 0.0
    %89 = vmatprep.subr.mxu0 0.0
    %90 = vmatpush1.msra.mxu0 0.0
    %91 = vmatprep.subr.mxu0 0.0
    %92 = vmatpush1.msra.mxu0 0.0
    %93 = vmatprep.mubr.f32.mxu0 0.0
    %94 = vmatmul.mubr.f32.gmra.mrb[0].mxu0 %v27
    %v95 = vpop.f32.mrb[0].mxu0
    %v96 = vadd.f32 0.0, %v95
    %v97 = vpop.f32.mrb[0].mxu0
    %98 = vdwg.mxu0
    %v99 = vstv %s19
    %v100 = vmul.f32 %v99, %v96
    %vm101 = vcmask 64512
    %v102 = vsel %vm101, %v100, -inf
    %v103 = vrot.slane %v102, 4
    %v104 = vmax.f32 %v102, %v103
    %v105 = vrot.slane %v104, 2
    %v106 = vmax.f32 %v104, %v105
    %v107 = vrot.slane %v106, 1
    %v108 = vmax.f32 %v106, %v107
    %v109 = vsub.f32 %v100, %v108
    %v110 = vmul.f32 %v109, 1.442695
    %v111 = vpow.pop %v110
    %v112 = vsel %vm101, %v111, 0.0
    %v113 = vrot.slane %v112, 4
    %v114 = vadd.f32 %v112, %v113
    %v115 = vrot.slane %v114, 2
    %v116 = vadd.f32 %v114, %v115
    %v117 = vrot.slane %v116, 1
    %v118 = vadd.f32 %v116, %v117
    %v119 = vlog2.pop %v118
    %v120 = vmul.f32 %v119, 0.6931472
    %v121 = vadd.f32 %v108, %v120
    %vm122 = vcmask 57344
    %123 = vst.msk [vmem:[#allocation8] sm:$0x1] %vm122, %v121
    %p124 = scmp.eq.s32.totalorder 0, 0
    // Predicated region
    $region14: #{tpu_custom_call.1} parent=1 // pred_check
      %p125 = pneg %p124
    $region15: #{tpu_custom_call.1} parent=1 // pred_check_branch
      %127 = sbr.rel (%p125) target = $region17
    $region16: #{tpu_custom_call.1} parent=1 // pred_region
      %vm128 = vcmask 7168
      %129 = vst.msk [vmem:[#allocation2] sm:$0xff] %vm128, -inf
      %130 = vst.msk [vmem:[#allocation3] sm:$0xff] %vm128, 0.0
      %131 = vst.msk [vmem:[#allocation4] sm:$0xff] %vm128, 0.0
    $region17: #{tpu_custom_call.1} parent=1 // pred_fallthru
      _
    %v132 = vld [vmem:[#allocation2] sm:$0xff]
    %133 = vmax.xlane.f32.xlu0 %v102
    %v134 = vpop.xlane.xlu0 %133
    %v135 = vmax.f32 %v132, %v134
    %v136 = vld [vmem:[#allocation3] sm:$0xff]
    %v137 = vsub.f32 %v132, %v135
    %v138 = vmul.f32 %v137, 1.442695
    %v139 = vpow.pop %v138
    %v140 = vmul.f32 %v136, %v139
    %142 = vset.pattern.permute.xlu0 0
    %143 = vperm.xlu0 %142, %v135
    %v144 = vpop.permute.xlu0 %143
    %v146 = vsub.f32 %v100, %v144
    %v147 = vmul.f32 %v146, 1.442695
    %v148 = vpow.pop %v147
    %v149 = vsel %vm101, %v148, 0.0
    %150 = vadd.xlane.f32.xlu0 %v149
    %v151 = vpop.xlane.xlu0 %150
    %v152 = vadd.f32 %v140, %v151
    %vm153 = vcmask 7168
    %154 = vst.msk [vmem:[#allocation3] sm:$0xff] %vm153, %v152
    %155 = vst.msk [vmem:[#allocation2] sm:$0xff] %vm153, %v135
    %p156 = scmp.eq.s32.totalorder 0, 0
    // Predicated region
    $region18: #{tpu_custom_call.1} parent=1 // pred_check
      %p157 = pneg %p156
    $region19: #{tpu_custom_call.1} parent=1 // pred_check_branch
      %159 = sbr.rel (%p157) target = $region21
    $region20: #{tpu_custom_call.1} parent=1 // pred_region
      %v160 = vlaneseq
      %v161 = vshrl.u32 %v160, 7
      %v162 = vlaneseq
      %v163 = vand.u32 %v162, 127
      %vm164 = vcmp.eq.s32.totalorder %v161, %v163
      %v165 = vsel %vm164, %v100, 0.0
      %v166 = vsel %vm101, %v165, 0.0
      %167 = vadd.xlane.f32.xlu0 %v166
      %v168 = vpop.xlane.xlu0 %167
      %169 = vst.msk [vmem:[#allocation4] sm:$0xff] %vm153, %v168
    $region21: #{tpu_custom_call.1} parent=1 // pred_fallthru
      _
    // Predicated region
    $region22: #{tpu_custom_call.1} parent=1 // pred_check
      %p170 = pneg %p124
    $region23: #{tpu_custom_call.1} parent=1 // pred_check_branch
      %172 = sbr.rel (%p170) target = $region25
    $region24: #{tpu_custom_call.1} parent=1 // pred_region
      %v173 = vld [vmem:[#allocation2] sm:$0xff]
      %v174 = vld [vmem:[#allocation3] sm:$0xff]
      %v175 = vlog2.pop %v174
      %v176 = vmul.f32 %v175, 0.6931472
      %v177 = vadd.f32 %v173, %v176
      %v178 = vld [vmem:[#allocation4] sm:$0xff]
      %v179 = vmul.f32 %v178, 2.0
      %v180 = vsub.f32 %v177, %v179
      %v181 = vsel %vm153, %v180, 0.0
      %182 = vadd.xlane.f32.xlu0 %v181
      %v183 = vpop.xlane.xlu0 %182
      %v184 = vrot.slane %v183, 4
      %v185 = vadd.f32 %v183, %v184
      %v186 = vrot.slane %v185, 2
      %v187 = vadd.f32 %v185, %v186
      %v188 = vrot.slane %v187, 1
      %v189 = vadd.f32 %v187, %v188
      %s190 = vtos %v189
      %v191 = vstv %s190
      %vm192 = vcmask 0
      %193 = vst.msk [vmem:[#allocation6] sm:$0x1] %vm192, %v191
    $region25: #{tpu_custom_call.1} parent=1 // pred_fallthru
      _
    // Predicated region
    $region26: #{tpu_custom_call.1} parent=1 // pred_check
      _
    $region27: #{tpu_custom_call.1} parent=1 // pred_check_branch
      %195 = sbr.rel (0) target = $region29
    $region28: #{tpu_custom_call.1} parent=1 // pred_region
      %s197 = ssub.s32 16, 16
      %198 = vsyncadd [#allocation7], %s197
      %s200 = sshll.u32 [#allocation6], 4
      %s201 = int_to_ptr.vmem [resolvable:$true] %s200
      %203 = dma.vmem_to_hbm [thread:$0]  %s201, 16, %s3, [#allocation7]
    $region29: #{tpu_custom_call.1} parent=1 // pred_fallthru
      _
    // Predicated region
    $region30: #{tpu_custom_call.1} parent=1 // pred_check
      _
    $region31: #{tpu_custom_call.1} parent=1 // pred_check_branch
      %205 = sbr.rel (0) target = $region33
    $region32: #{tpu_custom_call.1} parent=1 // pred_region
      %s207 = ssub.s32 16, 16
      %208 = vsyncadd [#allocation9], %s207
      %s210 = sshll.u32 [#allocation8], 4
      %s211 = int_to_ptr.vmem [resolvable:$true] %s210
      %213 = dma.vmem_to_hbm [thread:$0]  %s211, 16, %s4, [#allocation9]
    $region33: #{tpu_custom_call.1} parent=1 // pred_fallthru
      _
    // Predicated region
    $region34: #{tpu_custom_call.1} parent=1 // pred_check
      _
    $region35: #{tpu_custom_call.1} parent=1 // pred_check_branch
      %215 = sbr.rel (0) target = $region37
    $region36: #{tpu_custom_call.1} parent=1 // pred_region
      %216 = dma.done [#allocation7], 16
    $region37: #{tpu_custom_call.1} parent=1 // pred_fallthru
      _
    // Predicated region
    $region38: #{tpu_custom_call.1} parent=1 // pred_check
      _
    $region39: #{tpu_custom_call.1} parent=1 // pred_check_branch
      %218 = sbr.rel (0) target = $region41
    $region40: #{tpu_custom_call.1} parent=1 // pred_region
      %219 = dma.done [#allocation9], 16
    $region41: #{tpu_custom_call.1} parent=1 // pred_fallthru
      _
    %220 = vsyncpa [#allocation7], 1
    %221 = vsyncpa [#allocation9], 1

</llo_original>
